<compile_context>
chip_gen: v5e
topology: v5e:2x2
jax: 0.10.0
libtpu: 0.0.40
codegen_flags: <defaults>
</compile_context>

<pallas_src>
import jax
import jax.numpy as jnp
from jax.experimental import pallas as pl
from jax.experimental.pallas import tpu as pltpu


def _mlp_kernel(x_ref, w1_ref, b1_ref, w2_ref, b2_ref, w3_ref, b3_ref, o_ref):
    # x_ref: (block_m, 2H) tile of the batch; weights are full, VMEM-resident.
    x = x_ref[...]                                            # (bm, 2H)

    # Dropout(p=0.1) in eval mode == identity.

    # Linear(2H -> H) + Tanh   (MXU dot, f32 accumulate; tanh on the EUP)
    h1 = jnp.dot(x, w1_ref[...], preferred_element_type=jnp.float32)
    h1 = jnp.tanh(h1 + b1_ref[...])                           # (bm, H)

    # Linear(H -> H//2) + Tanh
    h2 = jnp.dot(h1, w2_ref[...], preferred_element_type=jnp.float32)
    h2 = jnp.tanh(h2 + b2_ref[...])                           # (bm, H//2)

    # Linear(H//2 -> 1): VPU multiply + lane reduce instead of an N=1 MXU dot.
    # w3_ref is a (1, H//2) row; b3 comes from SMEM as a scalar.
    out = jnp.sum(h2 * w3_ref[...], axis=-1, keepdims=True) + b3_ref[0, 0]

    o_ref[...] = out.astype(o_ref.dtype)                      # (bm, 1)


def my_sequential_forward(x, params, block_m=512):
    """x: (batch, 2*input_size) float32.

    params: dict with pre-transposed weights (see init_params):
      w1t (2H, H), b1 (1, H), w2t (H, H//2), b2 (1, H//2),
      w3_row (1, H//2), b3 (1, 1).
    """
    w1t, b1 = params["w1t"], params["b1"]
    w2t, b2 = params["w2t"], params["b2"]
    w3_row, b3 = params["w3_row"], params["b3"]

    batch, in_dim = x.shape
    h = w1t.shape[1]
    h2 = w2t.shape[1]

    # Batch tile: multiple of 8, no larger than needed for the (padded) batch.
    bm = min(block_m, max(8, batch))
    bm = max(8, (bm // 8) * 8)
    n_blocks = pl.cdiv(batch, bm)
    padded = n_blocks * bm
    if padded != batch:
        x_in = jnp.zeros((padded, in_dim), x.dtype).at[:batch].set(x)
    else:
        x_in = x

    out = pl.pallas_call(
        _mlp_kernel,
        out_shape=jax.ShapeDtypeStruct((padded, 1), x.dtype),
        grid=(n_blocks,),
        in_specs=[
            # x: tiled over batch (last dim == full array dim, so no (.,128)
            # divisibility requirement).
            pl.BlockSpec((bm, in_dim), lambda i: (i, 0)),
            # Weights / biases: full arrays, VMEM-resident across grid steps.
            pl.BlockSpec((in_dim, h), lambda i: (0, 0)),
            pl.BlockSpec((1, h), lambda i: (0, 0)),
            pl.BlockSpec((h, h2), lambda i: (0, 0)),
            pl.BlockSpec((1, h2), lambda i: (0, 0)),
            pl.BlockSpec((1, h2), lambda i: (0, 0)),
            # b3: single scalar via SMEM.
            pl.BlockSpec(memory_space=pltpu.MemorySpace.SMEM),
        ],
        out_specs=pl.BlockSpec((bm, 1), lambda i: (i, 0)),
        compiler_params=pltpu.CompilerParams(
            dimension_semantics=("parallel",),
        ),
    )(x_in, w1t, b1, w2t, b2, w3_row, b3)

    if padded != batch:
        out = out[:batch]
    return out


def init_params(input_size, key):
    """nn.Linear-style init; weights stored pre-transposed (in, out), biases (1, out)."""
    h = input_size
    ks = jax.random.split(key, 6)

    def lin_init(kw, kb, out_f, in_f):
        bound = 1.0 / jnp.sqrt(jnp.float32(in_f))
        w = jax.random.uniform(kw, (out_f, in_f), jnp.float32, -bound, bound)
        b = jax.random.uniform(kb, (out_f,), jnp.float32, -bound, bound)
        return w, b

    w1, b1 = lin_init(ks[0], ks[1], h, 2 * h)       # (H, 2H), (H,)
    w2, b2 = lin_init(ks[2], ks[3], h // 2, h)      # (H//2, H), (H//2,)
    w3, b3 = lin_init(ks[4], ks[5], 1, h // 2)      # (1, H//2), (1,)

    return {
        "w1t": w1.T,                    # (2H, H)
        "b1": b1.reshape(1, -1),        # (1, H)
        "w2t": w2.T,                    # (H, H//2)
        "b2": b2.reshape(1, -1),        # (1, H//2)
        "w3_row": w3,                   # (1, H//2)  — used as a row in the kernel
        "b3": b3.reshape(1, 1),         # (1, 1)     — SMEM scalar
    }


def reference_forward(x, params):
    h1 = jnp.tanh(x @ params["w1t"] + params["b1"])
    h2 = jnp.tanh(h1 @ params["w2t"] + params["b2"])
    return h2 @ params["w3_row"].T + params["b3"]


if __name__ == "__main__":
    input_size = 32
    batch = 256                      # small, but >1 grid step with block_m=128

    key = jax.random.PRNGKey(0)
    kx, kp = jax.random.split(key)
    x = jax.random.normal(kx, (batch, 2 * input_size), jnp.float32)
    params = init_params(input_size, kp)

    out = my_sequential_forward(x, params, block_m=128)
    out = jax.block_until_ready(out)

    ref = reference_forward(x, params)
    assert out.shape == (batch, 1), out.shape
    assert jnp.allclose(out, ref, atol=1e-5, rtol=1e-5), float(jnp.max(jnp.abs(out - ref)))

    print("KERNEL_OK")
</pallas_src>

<mosaic_0001>
module attributes {stable_mosaic.version = 11 : i64} {
  func.func @_mlp_kernel(%arg0: i32, %arg1: memref<128x64xf32, #tpu.memory_space<vmem>>, %arg2: memref<64x32xf32, #tpu.memory_space<vmem>>, %arg3: memref<1x32xf32, #tpu.memory_space<vmem>>, %arg4: memref<32x16xf32, #tpu.memory_space<vmem>>, %arg5: memref<1x16xf32, #tpu.memory_space<vmem>>, %arg6: memref<1x16xf32, #tpu.memory_space<vmem>>, %arg7: memref<1x1xf32, #tpu.memory_space<smem>>, %arg8: memref<128x1xf32, #tpu.memory_space<vmem>>) attributes {dimension_semantics = [#tpu.dimension_semantics<parallel>], iteration_bounds = array<i64: 2>, scalar_prefetch = 0 : i64, scratch_operands = 0 : i64, tpu.core_type = #tpu.core_type<tc>, window_params = [{transform_indices = @transform_0, window_bounds = array<i64: 128, 64>}, {pipeline_mode = #tpu.pipeline_mode<synchronous>, transform_indices = @transform_1, window_bounds = array<i64: 64, 32>}, {pipeline_mode = #tpu.pipeline_mode<synchronous>, transform_indices = @transform_2, window_bounds = array<i64: 1, 32>}, {pipeline_mode = #tpu.pipeline_mode<synchronous>, transform_indices = @transform_3, window_bounds = array<i64: 32, 16>}, {pipeline_mode = #tpu.pipeline_mode<synchronous>, transform_indices = @transform_4, window_bounds = array<i64: 1, 16>}, {pipeline_mode = #tpu.pipeline_mode<synchronous>, transform_indices = @transform_5, window_bounds = array<i64: 1, 16>}, {transform_indices = @transform_6, window_bounds = array<i64: 1, 1>}, {transform_indices = @transform_7, window_bounds = array<i64: 128, 1>}]} {
    %c0 = arith.constant 0 : index
    %c0_0 = arith.constant 0 : index
    %0 = vector.load %arg1[%c0, %c0_0] : memref<128x64xf32, #tpu.memory_space<vmem>>, vector<128x64xf32>
    %c0_1 = arith.constant 0 : index
    %c0_2 = arith.constant 0 : index
    %1 = vector.load %arg2[%c0_1, %c0_2] : memref<64x32xf32, #tpu.memory_space<vmem>>, vector<64x32xf32>
    %cst = arith.constant dense<0.000000e+00> : vector<128x32xf32>
    %2 = tpu.matmul %0, %1, %cst {dimension_numbers = #tpu.dot_dimension_numbers<[1], [0], [0], [1], [0, 0, 1, 1], [], []>} : vector<128x64xf32>, vector<64x32xf32>, vector<128x32xf32> -> vector<128x32xf32>
    %c0_3 = arith.constant 0 : index
    %c0_4 = arith.constant 0 : index
    %3 = vector.load %arg3[%c0_3, %c0_4] : memref<1x32xf32, #tpu.memory_space<vmem>>, vector<1x32xf32>
    %4 = vector.broadcast %3 : vector<1x32xf32> to vector<128x32xf32>
    %5 = arith.addf %2, %4 : vector<128x32xf32>
    %6 = math.tanh %5 : vector<128x32xf32>
    %c0_5 = arith.constant 0 : index
    %c0_6 = arith.constant 0 : index
    %7 = vector.load %arg4[%c0_5, %c0_6] : memref<32x16xf32, #tpu.memory_space<vmem>>, vector<32x16xf32>
    %cst_7 = arith.constant dense<0.000000e+00> : vector<128x16xf32>
    %8 = tpu.matmul %6, %7, %cst_7 {dimension_numbers = #tpu.dot_dimension_numbers<[1], [0], [0], [1], [0, 0, 1, 1], [], []>} : vector<128x32xf32>, vector<32x16xf32>, vector<128x16xf32> -> vector<128x16xf32>
    %c0_8 = arith.constant 0 : index
    %c0_9 = arith.constant 0 : index
    %9 = vector.load %arg5[%c0_8, %c0_9] : memref<1x16xf32, #tpu.memory_space<vmem>>, vector<1x16xf32>
    %10 = vector.broadcast %9 : vector<1x16xf32> to vector<128x16xf32>
    %11 = arith.addf %8, %10 : vector<128x16xf32>
    %12 = math.tanh %11 : vector<128x16xf32>
    %c0_10 = arith.constant 0 : index
    %c0_11 = arith.constant 0 : index
    %13 = vector.load %arg6[%c0_10, %c0_11] : memref<1x16xf32, #tpu.memory_space<vmem>>, vector<1x16xf32>
    %14 = vector.broadcast %13 : vector<1x16xf32> to vector<128x16xf32>
    %15 = arith.mulf %12, %14 : vector<128x16xf32>
    %cst_12 = arith.constant dense<0.000000e+00> : vector<128xf32>
    %16 = vector.multi_reduction <add>, %15, %cst_12 [1] : vector<128x16xf32> to vector<128xf32>
    %17 = vector.shape_cast %16 : vector<128xf32> to vector<128x1xf32>
    %c0_13 = arith.constant 0 : index
    %c0_14 = arith.constant 0 : index
    %18 = memref.load %arg7[%c0_13, %c0_14] : memref<1x1xf32, #tpu.memory_space<smem>>
    %19 = vector.broadcast %18 : f32 to vector<128x1xf32>
    %20 = arith.addf %17, %19 : vector<128x1xf32>
    %c0_15 = arith.constant 0 : index
    %c0_16 = arith.constant 0 : index
    %21 = vector.load %arg8[%c0_15, %c0_16] : memref<128x1xf32, #tpu.memory_space<vmem>>, vector<128x1xf32>
    tpu.vector_store %arg8[%c0_15, %c0_16], %20 {strides = array<i32>} : memref<128x1xf32, #tpu.memory_space<vmem>>, vector<128x1xf32>,
    return
  }
  func.func @transform_0(%arg0: i32) -> (i32, i32) {
    %c0_i32 = arith.constant 0 : i32
    %c0_i32_0 = arith.constant 0 : i32
    return %arg0, %c0_i32 : i32, i32
  }
  func.func @transform_1(%arg0: i32) -> (i32, i32) {
    %c0_i32 = arith.constant 0 : i32
    %c0_i32_0 = arith.constant 0 : i32
    %c0_i32_1 = arith.constant 0 : i32
    return %c0_i32, %c0_i32_0 : i32, i32
  }
  func.func @transform_2(%arg0: i32) -> (i32, i32) {
    %c0_i32 = arith.constant 0 : i32
    %c0_i32_0 = arith.constant 0 : i32
    %c0_i32_1 = arith.constant 0 : i32
    return %c0_i32, %c0_i32_0 : i32, i32
  }
  func.func @transform_3(%arg0: i32) -> (i32, i32) {
    %c0_i32 = arith.constant 0 : i32
    %c0_i32_0 = arith.constant 0 : i32
    %c0_i32_1 = arith.constant 0 : i32
    return %c0_i32, %c0_i32_0 : i32, i32
  }
  func.func @transform_4(%arg0: i32) -> (i32, i32) {
    %c0_i32 = arith.constant 0 : i32
    %c0_i32_0 = arith.constant 0 : i32
    %c0_i32_1 = arith.constant 0 : i32
    return %c0_i32, %c0_i32_0 : i32, i32
  }
  func.func @transform_5(%arg0: i32) -> (i32, i32) {
    %c0_i32 = arith.constant 0 : i32
    %c0_i32_0 = arith.constant 0 : i32
    %c0_i32_1 = arith.constant 0 : i32
    return %c0_i32, %c0_i32_0 : i32, i32
  }
  func.func @transform_6(%arg0: i32) -> (i32, i32) {
    %c0_i32 = arith.constant 0 : i32
    %c0_i32_0 = arith.constant 0 : i32
    %c0_i32_1 = arith.constant 0 : i32
    return %c0_i32, %c0_i32_0 : i32, i32
  }
  func.func @transform_7(%arg0: i32) -> (i32, i32) {
    %c0_i32 = arith.constant 0 : i32
    %c0_i32_0 = arith.constant 0 : i32
    return %arg0, %c0_i32 : i32, i32
  }
}

</mosaic_0001>

<llo_original>
// kernel: tpu_custom_call.1
$region0: #{tpu_custom_call.1}
  #allocation0 [shape = 'u32[]', space=smem, size = 0x4, offset = 0x4, fixed_abs, tag = 'smem constant byte address 0x4 - core index']
  #allocation1 [shape = 'u32[72,128]{1,0:T(1,128)}', space=vmem, size = 0x9000, scoped, tag = 'internal scratch']
  #allocation2 [shape = 'f32[1,1]{1,0:T(1,128)S(6)}', space=smem, size = 0x200, scoped, tag = 'scoped memory for tpu_custom_call.1']
  %s0 = inlined_call_operand.vmem [shape: f32[256,64], index: 0, kind: input, shape index: {}]
  %s1 = inlined_call_operand.vmem [shape: f32[64,32], index: 1, kind: input, shape index: {}]
  %s2 = inlined_call_operand.vmem [shape: f32[1,32], index: 2, kind: input, shape index: {}]
  %s3 = inlined_call_operand.vmem [shape: f32[32,16], index: 3, kind: input, shape index: {}]
  %s4 = inlined_call_operand.vmem [shape: f32[1,16], index: 4, kind: input, shape index: {}]
  %s5 = inlined_call_operand.vmem [shape: f32[1,16], index: 5, kind: input, shape index: {}]
  %s6 = inlined_call_operand.<no memory space> [shape: f32[1,1], index: 6, kind: input, shape index: {}]
  %s7 = inlined_call_operand.vmem [shape: f32[256,1], index: 7, kind: output, shape index: {}]
  %s8 = sld [smem:[#allocation0]]
  $region61: #{tpu_custom_call.1} parent=0
    _
  %s10 = ssub.s32 1, %s8
  %s11 = scalar_select 0, %s10, %s8
  %12 = sst [smem:[#allocation2]] %s6
  loop: start=0, step=1, limit=4
  $region2: #{tpu_custom_call.1} parent=0 // loop_pre_header
    _
  $region3: #{tpu_custom_call.1} parent=0 // loop_header
    %s14 = sphi 0, %s18
    %p15 = scmp.ge.s32.totalorder %s14, 4
    %s24 = sphi 0, %s26
    %s27 = sphi 0, %s24
    %s28 = sphi 0, %s27
    %s44 = sphi 0, %s28
    %s48 = sphi 0, %s48
    %s50 = sphi 0, %s48
    %s51 = sphi 0, %s50
    %s65 = sphi 0, %s51
    %s69 = sphi 0, %s69
    %s71 = sphi 0, %s69
    %s72 = sphi 0, %s71
    %s86 = sphi 0, %s72
    %s90 = sphi 0, %s90
    %s92 = sphi 0, %s90
    %s93 = sphi 0, %s92
    %s107 = sphi 0, %s93
    %s111 = sphi 0, %s111
    %s113 = sphi 0, %s111
    %s114 = sphi 0, %s113
    %s128 = sphi 0, %s114
    %s132 = sphi 0, %s132
    %s134 = sphi 0, %s132
    %s135 = sphi 0, %s134
    %s149 = sphi 0, %s135
    %s153 = sphi 0, %s153
    %s155 = sphi 0, %s153
    %s156 = sphi 0, %s155
    %s170 = sphi 0, %s156
    %s176 = sphi 0, %s178
    %s179 = sphi 0, %s176
    %s180 = sphi 0, %s179
    %s196 = sphi 0, %s180
  $region4: #{tpu_custom_call.1} parent=0 // loop_header_branch
    %17 = sbr.rel (%p15) target = $region8
  $region5: #{tpu_custom_call.1} parent=0 // loop_body
    %s19 = ssub.s32 %s14, 1
    %s20 = ssub.s32 %s14, 2
    %s21 = sadd.s32 %s14, 1
    %s22 = ssub.s32 %s14, %s21
    %p23 = scmp.eq.s32.totalorder %s22, 0
    %s25 = sadd.s32 %s24, 1
    %s26 = scalar_select %p23, %s24, %s25
    %p29 = pneg %p23
    %p30 = scmp.eq.s32.totalorder %s14, 1
    %p31 = por %p29, %p30
    %p32 = scmp.ne.s32.totalorder %s24, %s27
    %p33 = scmp.eq.s32.totalorder %s14, 0
    %p34 = por %p32, %p33
    %p35 = scmp.ne.s32.totalorder %s24, %s27
    %p36 = scmp.eq.s32.totalorder %s19, 1
    %p37 = por %p35, %p36
    %p38 = scmp.ne.s32.totalorder %s27, %s28
    %p39 = scmp.eq.s32.totalorder %s19, 0
    %p40 = por %p38, %p39
    %p41 = scmp.ne.s32.totalorder %s27, %s28
    %p42 = scmp.eq.s32.totalorder %s20, 1
    %p43 = por %p41, %p42
    %p45 = scmp.ne.s32.totalorder %s28, %s44
    %p46 = scmp.eq.s32.totalorder %s20, 0
    %p47 = por %p45, %p46
    %s49 = sadd.s32 %s48, 1
    %p52 = scmp.eq.s32.totalorder %s14, 1
    %p53 = scmp.ne.s32.totalorder %s48, %s50
    %p54 = scmp.eq.s32.totalorder %s14, 0
    %p55 = por %p53, %p54
    %p56 = scmp.ne.s32.totalorder %s48, %s50
    %p57 = scmp.eq.s32.totalorder %s19, 1
    %p58 = por %p56, %p57
    %p59 = scmp.ne.s32.totalorder %s50, %s51
    %p60 = scmp.eq.s32.totalorder %s19, 0
    %p61 = por %p59, %p60
    %p62 = scmp.ne.s32.totalorder %s50, %s51
    %p63 = scmp.eq.s32.totalorder %s20, 1
    %p64 = por %p62, %p63
    %p66 = scmp.ne.s32.totalorder %s51, %s65
    %p67 = scmp.eq.s32.totalorder %s20, 0
    %p68 = por %p66, %p67
    %s70 = sadd.s32 %s69, 1
    %p73 = scmp.eq.s32.totalorder %s14, 1
    %p74 = scmp.ne.s32.totalorder %s69, %s71
    %p75 = scmp.eq.s32.totalorder %s14, 0
    %p76 = por %p74, %p75
    %p77 = scmp.ne.s32.totalorder %s69, %s71
    %p78 = scmp.eq.s32.totalorder %s19, 1
    %p79 = por %p77, %p78
    %p80 = scmp.ne.s32.totalorder %s71, %s72
    %p81 = scmp.eq.s32.totalorder %s19, 0
    %p82 = por %p80, %p81
    %p83 = scmp.ne.s32.totalorder %s71, %s72
    %p84 = scmp.eq.s32.totalorder %s20, 1
    %p85 = por %p83, %p84
    %p87 = scmp.ne.s32.totalorder %s72, %s86
    %p88 = scmp.eq.s32.totalorder %s20, 0
    %p89 = por %p87, %p88
    %s91 = sadd.s32 %s90, 1
    %p94 = scmp.eq.s32.totalorder %s14, 1
    %p95 = scmp.ne.s32.totalorder %s90, %s92
    %p96 = scmp.eq.s32.totalorder %s14, 0
    %p97 = por %p95, %p96
    %p98 = scmp.ne.s32.totalorder %s90, %s92
    %p99 = scmp.eq.s32.totalorder %s19, 1
    %p100 = por %p98, %p99
    %p101 = scmp.ne.s32.totalorder %s92, %s93
    %p102 = scmp.eq.s32.totalorder %s19, 0
    %p103 = por %p101, %p102
    %p104 = scmp.ne.s32.totalorder %s92, %s93
    %p105 = scmp.eq.s32.totalorder %s20, 1
    %p106 = por %p104, %p105
    %p108 = scmp.ne.s32.totalorder %s93, %s107
    %p109 = scmp.eq.s32.totalorder %s20, 0
    %p110 = por %p108, %p109
    %s112 = sadd.s32 %s111, 1
    %p115 = scmp.eq.s32.totalorder %s14, 1
    %p116 = scmp.ne.s32.totalorder %s111, %s113
    %p117 = scmp.eq.s32.totalorder %s14, 0
    %p118 = por %p116, %p117
    %p119 = scmp.ne.s32.totalorder %s111, %s113
    %p120 = scmp.eq.s32.totalorder %s19, 1
    %p121 = por %p119, %p120
    %p122 = scmp.ne.s32.totalorder %s113, %s114
    %p123 = scmp.eq.s32.totalorder %s19, 0
    %p124 = por %p122, %p123
    %p125 = scmp.ne.s32.totalorder %s113, %s114
    %p126 = scmp.eq.s32.totalorder %s20, 1
    %p127 = por %p125, %p126
    %p129 = scmp.ne.s32.totalorder %s114, %s128
    %p130 = scmp.eq.s32.totalorder %s20, 0
    %p131 = por %p129, %p130
    %s133 = sadd.s32 %s132, 1
    %p136 = scmp.eq.s32.totalorder %s14, 1
    %p137 = scmp.ne.s32.totalorder %s132, %s134
    %p138 = scmp.eq.s32.totalorder %s14, 0
    %p139 = por %p137, %p138
    %p140 = scmp.ne.s32.totalorder %s132, %s134
    %p141 = scmp.eq.s32.totalorder %s19, 1
    %p142 = por %p140, %p141
    %p143 = scmp.ne.s32.totalorder %s134, %s135
    %p144 = scmp.eq.s32.totalorder %s19, 0
    %p145 = por %p143, %p144
    %p146 = scmp.ne.s32.totalorder %s134, %s135
    %p147 = scmp.eq.s32.totalorder %s20, 1
    %p148 = por %p146, %p147
    %p150 = scmp.ne.s32.totalorder %s135, %s149
    %p151 = scmp.eq.s32.totalorder %s20, 0
    %p152 = por %p150, %p151
    %s154 = sadd.s32 %s153, 1
    %p157 = scmp.eq.s32.totalorder %s14, 1
    %p158 = scmp.ne.s32.totalorder %s153, %s155
    %p159 = scmp.eq.s32.totalorder %s14, 0
    %p160 = por %p158, %p159
    %p161 = scmp.ne.s32.totalorder %s153, %s155
    %p162 = scmp.eq.s32.totalorder %s19, 1
    %p163 = por %p161, %p162
    %p164 = scmp.ne.s32.totalorder %s155, %s156
    %p165 = scmp.eq.s32.totalorder %s19, 0
    %p166 = por %p164, %p165
    %p167 = scmp.ne.s32.totalorder %s155, %s156
    %p168 = scmp.eq.s32.totalorder %s20, 1
    %p169 = por %p167, %p168
    %p171 = scmp.ne.s32.totalorder %s156, %s170
    %p172 = scmp.eq.s32.totalorder %s20, 0
    %p173 = por %p171, %p172
    %s174 = ssub.s32 %s14, %s21
    %p175 = scmp.eq.s32.totalorder %s174, 0
    %s177 = sadd.s32 %s176, 1
    %s178 = scalar_select %p175, %s176, %s177
    %p181 = pneg %p175
    %p182 = scmp.eq.s32.totalorder %s14, 1
    %p183 = por %p181, %p182
    %p184 = scmp.ne.s32.totalorder %s176, %s179
    %p185 = scmp.eq.s32.totalorder %s14, 0
    %p186 = por %p184, %p185
    %p187 = scmp.ne.s32.totalorder %s176, %s179
    %p188 = scmp.eq.s32.totalorder %s19, 1
    %p189 = por %p187, %p188
    %p190 = scmp.ne.s32.totalorder %s179, %s180
    %p191 = scmp.eq.s32.totalorder %s19, 0
    %p192 = por %p190, %p191
    %p193 = scmp.ne.s32.totalorder %s179, %s180
    %p194 = scmp.eq.s32.totalorder %s20, 1
    %p195 = por %p193, %p194
    %p197 = scmp.ne.s32.totalorder %s180, %s196
    %p198 = scmp.eq.s32.totalorder %s20, 0
    %p199 = por %p197, %p198
    %p200 = scmp.le.s32.totalorder 1, %s14
    %p201 = scmp.lt.s32.totalorder %s14, 3
    %p202 = pnand %p200, %p201
    %p203 = pneg %p202
    // Predicated region
    $region9: #{tpu_custom_call.1} parent=5 // pred_check
      _
    $region10: #{tpu_custom_call.1} parent=5 // pred_check_branch
      %205 = sbr.rel (%p202) target = $region12
    $region11: #{tpu_custom_call.1} parent=5 // pred_region
      %s206 = ssub.s32 %s14, 1
      // Predicated region
      $region13: #{tpu_custom_call.1} parent=11 // pred_check
        %p207 = pneg %p61
      $region14: #{tpu_custom_call.1} parent=11 // pred_check_branch
        %209 = sbr.rel (%p207) target = $region16
      $region15: #{tpu_custom_call.1} parent=11 // pred_region
        _
      $region16: #{tpu_custom_call.1} parent=11 // pred_fallthru
        _
      // Predicated region
      $region17: #{tpu_custom_call.1} parent=11 // pred_check
        %p210 = pneg %p82
      $region18: #{tpu_custom_call.1} parent=11 // pred_check_branch
        %212 = sbr.rel (%p210) target = $region20
      $region19: #{tpu_custom_call.1} parent=11 // pred_region
        _
      $region20: #{tpu_custom_call.1} parent=11 // pred_fallthru
        _
      // Predicated region
      $region21: #{tpu_custom_call.1} parent=11 // pred_check
        %p213 = pneg %p103
      $region22: #{tpu_custom_call.1} parent=11 // pred_check_branch
        %215 = sbr.rel (%p213) target = $region24
      $region23: #{tpu_custom_call.1} parent=11 // pred_region
        _
      $region24: #{tpu_custom_call.1} parent=11 // pred_fallthru
        _
      // Predicated region
      $region25: #{tpu_custom_call.1} parent=11 // pred_check
        %p216 = pneg %p124
      $region26: #{tpu_custom_call.1} parent=11 // pred_check_branch
        %218 = sbr.rel (%p216) target = $region28
      $region27: #{tpu_custom_call.1} parent=11 // pred_region
        _
      $region28: #{tpu_custom_call.1} parent=11 // pred_fallthru
        _
      // Predicated region
      $region29: #{tpu_custom_call.1} parent=11 // pred_check
        %p219 = pneg %p145
      $region30: #{tpu_custom_call.1} parent=11 // pred_check_branch
        %221 = sbr.rel (%p219) target = $region32
      $region31: #{tpu_custom_call.1} parent=11 // pred_region
        _
      $region32: #{tpu_custom_call.1} parent=11 // pred_fallthru
        _
      // Predicated region
      $region33: #{tpu_custom_call.1} parent=11 // pred_check
        %p222 = pneg %p166
      $region34: #{tpu_custom_call.1} parent=11 // pred_check_branch
        %224 = sbr.rel (%p222) target = $region36
      $region35: #{tpu_custom_call.1} parent=11 // pred_region
        _
      $region36: #{tpu_custom_call.1} parent=11 // pred_fallthru
        _
    $region12: #{tpu_custom_call.1} parent=5 // pred_fallthru
      _
    %p225 = scmp.lt.s32.totalorder %s14, 2
    // Predicated region
    $region37: #{tpu_custom_call.1} parent=5 // pred_check
      %p226 = pneg %p225
    $region38: #{tpu_custom_call.1} parent=5 // pred_check_branch
      %228 = sbr.rel (%p226) target = $region40
    $region39: #{tpu_custom_call.1} parent=5 // pred_region
      // Predicated region
      $region41: #{tpu_custom_call.1} parent=39 // pred_check
        %p229 = pneg %p34
      $region42: #{tpu_custom_call.1} parent=39 // pred_check_branch
        %231 = sbr.rel (%p229) target = $region44
      $region43: #{tpu_custom_call.1} parent=39 // pred_region
        %s232 = smul.u32 16, %s14
        %p233 = scmp.lt.s32.totalorder %s232, 31
        %s234 = scalar_select %p233, %s232, 31
        %s235 = smul.addr %s234, 8
        %s236 = scalar_lea.vmem %s0, %s235
        %s237 = smul.u32 16, %s14
      $region44: #{tpu_custom_call.1} parent=39 // pred_fallthru
        _
    $region40: #{tpu_custom_call.1} parent=5 // pred_fallthru
      _
    %p238 = scmp.le.s32.totalorder 1, %s14
    %p239 = scmp.lt.s32.totalorder %s14, 3
    %p240 = pnand %p238, %p239
    %p241 = pneg %p240
    // Predicated region
    $region45: #{tpu_custom_call.1} parent=5 // pred_check
      _
    $region46: #{tpu_custom_call.1} parent=5 // pred_check_branch
      %243 = sbr.rel (%p240) target = $region48
    $region47: #{tpu_custom_call.1} parent=5 // pred_region
      %s244 = ssub.s32 %s14, 1
      %s245 = smul.u32 16, %s19
      %p246 = scmp.lt.s32.totalorder %s245, 31
      %s247 = scalar_select %p246, %s245, 31
      %s248 = smul.addr %s247, 8
      %s249 = scalar_lea.vmem %s0, %s248
      %p250 = pneg %p40
      %p251 = pneg %p37
      %p252 = pneg %p61
      %p253 = pneg %p58
      %p254 = pneg %p82
      %p255 = pneg %p79
      %p256 = pneg %p103
      %p257 = pneg %p100
      %p258 = pneg %p124
      %p259 = pneg %p121
      %p260 = pneg %p145
      %p261 = pneg %p142
      %p262 = pneg %p166
      %p263 = pneg %p163
      %p264 = pneg %p192
      %p265 = pneg %p189
      %s266 = smul.u32 16, %s19
      %p267 = scmp.lt.s32.totalorder %s266, 31
      %s268 = scalar_select %p267, %s266, 31
      %s269 = smul.addr %s268, 8
      %s270 = scalar_lea.vmem %s7, %s269
      %s271 = smul.u32 16, %s19
      %p272 = scmp.lt.s32.totalorder %s271, 31
      %s273 = scalar_select %p272, %s271, 31
      %s274 = smul.addr %s273, 8
      %s275 = scalar_lea.vmem %s0, %s274
      %s276 = smul.u32 16, %s19
      %s277 = smul.u32 16, %s19
      %p278 = scmp.lt.s32.totalorder %s277, 31
      %s279 = scalar_select %p278, %s277, 31
      %s280 = smul.addr %s279, 8
      %s281 = scalar_lea.vmem %s7, %s280
      %s282 = smul.u32 16, %s19
      %v283 = vld [vmem:[%s275] sm:$0xff]
      %v284 = vld [vmem:[%s275 + $0x8] sm:$0xff]
      %v285 = vld [vmem:[%s275 + $0x10] sm:$0xff]
      %v286 = vld [vmem:[%s275 + $0x18] sm:$0xff]
      %v287 = vld [vmem:[%s275 + $0x20] sm:$0xff]
      %v288 = vld [vmem:[%s275 + $0x28] sm:$0xff]
      %v289 = vld [vmem:[%s275 + $0x30] sm:$0xff]
      %v290 = vld [vmem:[%s275 + $0x38] sm:$0xff]
      %v291 = vld [vmem:[%s275 + $0x40] sm:$0xff]
      %v292 = vld [vmem:[%s275 + $0x48] sm:$0xff]
      %v293 = vld [vmem:[%s275 + $0x50] sm:$0xff]
      %v294 = vld [vmem:[%s275 + $0x58] sm:$0xff]
      %v295 = vld [vmem:[%s275 + $0x60] sm:$0xff]
      %v296 = vld [vmem:[%s275 + $0x68] sm:$0xff]
      %v297 = vld [vmem:[%s275 + $0x70] sm:$0xff]
      %v298 = vld [vmem:[%s275 + $0x78] sm:$0xff]
      %v299 = vld [vmem:[%s1] sm:$0xff]
      %v300 = vld [vmem:[%s1 + $0x8] sm:$0xff]
      %v301 = vld [vmem:[%s1 + $0x10] sm:$0xff]
      %v302 = vld [vmem:[%s1 + $0x18] sm:$0xff]
      %v303 = vld [vmem:[%s1 + $0x20] sm:$0xff]
      %v304 = vld [vmem:[%s1 + $0x28] sm:$0xff]
      %v305 = vld [vmem:[%s1 + $0x30] sm:$0xff]
      %v306 = vld [vmem:[%s1 + $0x38] sm:$0xff]
      %v307 = vld [vmem:[%s2] sm:$0x1]
      %v309 = vperm.slane %v307, 0
      %vm311 = vcmask 523264
      %v313 = vsel %vm311, %v283, 0
      %v316 = vsel %vm311, %v284, 0
      %v319 = vsel %vm311, %v285, 0
      %v322 = vsel %vm311, %v286, 0
      %v325 = vsel %vm311, %v287, 0
      %v328 = vsel %vm311, %v288, 0
      %v331 = vsel %vm311, %v289, 0
      %v334 = vsel %vm311, %v290, 0
      %v337 = vsel %vm311, %v291, 0
      %v340 = vsel %vm311, %v292, 0
      %v343 = vsel %vm311, %v293, 0
      %v346 = vsel %vm311, %v294, 0
      %v349 = vsel %vm311, %v295, 0
      %v352 = vsel %vm311, %v296, 0
      %v355 = vsel %vm311, %v297, 0
      %v358 = vsel %vm311, %v298, 0
      %360 = vmatpush.msra.mxu0 0.0
      %361 = vmatpush.msra.mxu0 0.0
      %362 = vmatpush.msra.mxu0 0.0
      %363 = vmatpush.msra.mxu0 0.0
      %364 = vmatpush.msra.mxu0 0.0
      %365 = vmatpush.msra.mxu0 0.0
      %366 = vmatpush.msra.mxu0 0.0
      %367 = vmatpush.msra.mxu0 0.0
      %368 = vmatpush.msra.mxu0 %v306
      %369 = vmatpush.msra.mxu0 %v305
      %370 = vmatpush.msra.mxu0 %v304
      %371 = vmatpush.msra.mxu0 %v303
      %372 = vmatpush.msra.mxu0 %v302
      %373 = vmatpush.msra.mxu0 %v301
      %374 = vmatpush.msra.mxu0 %v300
      %375 = vmatpush.msra.mxu0 %v299
      %376 = vmatmul.f32.gmra.mxu0 %v313
      %v377 = vpop.f32.mrf.mxu0
      %v378 = vadd.f32 %v309, %v377
      %379 = vmatmul.f32.gmra.mxu0 %v316
      %v380 = vpop.f32.mrf.mxu0
      %v381 = vadd.f32 %v309, %v380
      %382 = vmatmul.f32.gmra.mxu0 %v319
      %v383 = vpop.f32.mrf.mxu0
      %v384 = vadd.f32 %v309, %v383
      %385 = vmatmul.f32.gmra.mxu0 %v322
      %v386 = vpop.f32.mrf.mxu0
      %v387 = vadd.f32 %v309, %v386
      %388 = vmatmul.f32.gmra.mxu0 %v325
      %v389 = vpop.f32.mrf.mxu0
      %v390 = vadd.f32 %v309, %v389
      %391 = vmatmul.f32.gmra.mxu0 %v328
      %v392 = vpop.f32.mrf.mxu0
      %v393 = vadd.f32 %v309, %v392
      %394 = vmatmul.f32.gmra.mxu0 %v331
      %v395 = vpop.f32.mrf.mxu0
      %v396 = vadd.f32 %v309, %v395
      %397 = vmatmul.f32.gmra.mxu0 %v334
      %v398 = vpop.f32.mrf.mxu0
      %v399 = vadd.f32 %v309, %v398
      %400 = vmatmul.f32.gmra.mxu0 %v337
      %v401 = vpop.f32.mrf.mxu0
      %v402 = vadd.f32 %v309, %v401
      %403 = vmatmul.f32.gmra.mxu0 %v340
      %v404 = vpop.f32.mrf.mxu0
      %v405 = vadd.f32 %v309, %v404
      %406 = vmatmul.f32.gmra.mxu0 %v343
      %v407 = vpop.f32.mrf.mxu0
      %v408 = vadd.f32 %v309, %v407
      %409 = vmatmul.f32.gmra.mxu0 %v346
      %v410 = vpop.f32.mrf.mxu0
      %v411 = vadd.f32 %v309, %v410
      %412 = vmatmul.f32.gmra.mxu0 %v349
      %v413 = vpop.f32.mrf.mxu0
      %v414 = vadd.f32 %v309, %v413
      %415 = vmatmul.f32.gmra.mxu0 %v352
      %v416 = vpop.f32.mrf.mxu0
      %v417 = vadd.f32 %v309, %v416
      %418 = vmatmul.f32.gmra.mxu0 %v355
      %v419 = vpop.f32.mrf.mxu0
      %v420 = vadd.f32 %v309, %v419
      %421 = vmatmul.f32.gmra.mxu0 %v358
      %v422 = vpop.f32.mrf.mxu0
      %v423 = vadd.f32 %v309, %v422
      %424 = vdwg.mxu0
      %v425 = vtanh.pop %v378
      %v426 = vtanh.pop %v381
      %v427 = vtanh.pop %v384
      %v428 = vtanh.pop %v387
      %v429 = vtanh.pop %v390
      %v430 = vtanh.pop %v393
      %v431 = vtanh.pop %v396
      %v432 = vtanh.pop %v399
      %v433 = vtanh.pop %v402
      %v434 = vtanh.pop %v405
      %v435 = vtanh.pop %v408
      %v436 = vtanh.pop %v411
      %v437 = vtanh.pop %v414
      %v438 = vtanh.pop %v417
      %v439 = vtanh.pop %v420
      %v440 = vtanh.pop %v423
      %v441 = vld [vmem:[%s3] sm:$0xff]
      %v442 = vld [vmem:[%s3 + $0x8] sm:$0xff]
      %v443 = vld [vmem:[%s3 + $0x10] sm:$0xff]
      %v444 = vld [vmem:[%s3 + $0x18] sm:$0xff]
      %v445 = vld [vmem:[%s4] sm:$0x1]
      %v447 = vperm.slane %v445, 0
      %vm449 = vcmask 261120
      %v451 = vsel %vm449, %v425, 0
      %v454 = vsel %vm449, %v426, 0
      %v457 = vsel %vm449, %v427, 0
      %v460 = vsel %vm449, %v428, 0
      %v463 = vsel %vm449, %v429, 0
      %v466 = vsel %vm449, %v430, 0
      %v469 = vsel %vm449, %v431, 0
      %v472 = vsel %vm449, %v432, 0
      %v475 = vsel %vm449, %v433, 0
      %v478 = vsel %vm449, %v434, 0
      %v481 = vsel %vm449, %v435, 0
      %v484 = vsel %vm449, %v436, 0
      %v487 = vsel %vm449, %v437, 0
      %v490 = vsel %vm449, %v438, 0
      %v493 = vsel %vm449, %v439, 0
      %v496 = vsel %vm449, %v440, 0
      %498 = vmatpush.msra.mxu0 0.0
      %499 = vmatpush.msra.mxu0 0.0
      %500 = vmatpush.msra.mxu0 0.0
      %501 = vmatpush.msra.mxu0 0.0
      %502 = vmatpush.msra.mxu0 0.0
      %503 = vmatpush.msra.mxu0 0.0
      %504 = vmatpush.msra.mxu0 0.0
      %505 = vmatpush.msra.mxu0 0.0
      %506 = vmatpush.msra.mxu0 0.0
      %507 = vmatpush.msra.mxu0 0.0
      %508 = vmatpush.msra.mxu0 0.0
      %509 = vmatpush.msra.mxu0 0.0
      %510 = vmatpush.msra.mxu0 %v444
      %511 = vmatpush.msra.mxu0 %v443
      %512 = vmatpush.msra.mxu0 %v442
      %513 = vmatpush.msra.mxu0 %v441
      %514 = vmatmul.f32.gmra.mxu0 %v451
      %v515 = vpop.f32.mrf.mxu0
      %v516 = vadd.f32 %v447, %v515
      %517 = vmatmul.f32.gmra.mxu0 %v454
      %v518 = vpop.f32.mrf.mxu0
      %v519 = vadd.f32 %v447, %v518
      %520 = vmatmul.f32.gmra.mxu0 %v457
      %v521 = vpop.f32.mrf.mxu0
      %v522 = vadd.f32 %v447, %v521
      %523 = vmatmul.f32.gmra.mxu0 %v460
      %v524 = vpop.f32.mrf.mxu0
      %v525 = vadd.f32 %v447, %v524
      %526 = vmatmul.f32.gmra.mxu0 %v463
      %v527 = vpop.f32.mrf.mxu0
      %v528 = vadd.f32 %v447, %v527
      %529 = vmatmul.f32.gmra.mxu0 %v466
      %v530 = vpop.f32.mrf.mxu0
      %v531 = vadd.f32 %v447, %v530
      %532 = vmatmul.f32.gmra.mxu0 %v469
      %v533 = vpop.f32.mrf.mxu0
      %v534 = vadd.f32 %v447, %v533
      %535 = vmatmul.f32.gmra.mxu0 %v472
      %v536 = vpop.f32.mrf.mxu0
      %v537 = vadd.f32 %v447, %v536
      %538 = vmatmul.f32.gmra.mxu0 %v475
      %v539 = vpop.f32.mrf.mxu0
      %v540 = vadd.f32 %v447, %v539
      %541 = vmatmul.f32.gmra.mxu0 %v478
      %v542 = vpop.f32.mrf.mxu0
      %v543 = vadd.f32 %v447, %v542
      %544 = vmatmul.f32.gmra.mxu0 %v481
      %v545 = vpop.f32.mrf.mxu0
      %v546 = vadd.f32 %v447, %v545
      %547 = vmatmul.f32.gmra.mxu0 %v484
      %v548 = vpop.f32.mrf.mxu0
      %v549 = vadd.f32 %v447, %v548
      %550 = vmatmul.f32.gmra.mxu0 %v487
      %v551 = vpop.f32.mrf.mxu0
      %v552 = vadd.f32 %v447, %v551
      %553 = vmatmul.f32.gmra.mxu0 %v490
      %v554 = vpop.f32.mrf.mxu0
      %v555 = vadd.f32 %v447, %v554
      %556 = vmatmul.f32.gmra.mxu0 %v493
      %v557 = vpop.f32.mrf.mxu0
      %v558 = vadd.f32 %v447, %v557
      %559 = vmatmul.f32.gmra.mxu0 %v496
      %v560 = vpop.f32.mrf.mxu0
      %v561 = vadd.f32 %v447, %v560
      %562 = vdwg.mxu0
      %v563 = vtanh.pop %v516
      %v564 = vtanh.pop %v519
      %v565 = vtanh.pop %v522
      %v566 = vtanh.pop %v525
      %v567 = vtanh.pop %v528
      %v568 = vtanh.pop %v531
      %v569 = vtanh.pop %v534
      %v570 = vtanh.pop %v537
      %v571 = vtanh.pop %v540
      %v572 = vtanh.pop %v543
      %v573 = vtanh.pop %v546
      %v574 = vtanh.pop %v549
      %v575 = vtanh.pop %v552
      %v576 = vtanh.pop %v555
      %v577 = vtanh.pop %v558
      %v578 = vtanh.pop %v561
      %v579 = vld [vmem:[%s5] sm:$0x1]
      %v581 = vperm.slane %v579, 0
      %v583 = vmul.f32 %v563, %v581
      %v584 = vmul.f32 %v564, %v581
      %v585 = vmul.f32 %v565, %v581
      %v586 = vmul.f32 %v566, %v581
      %v587 = vmul.f32 %v567, %v581
      %v588 = vmul.f32 %v568, %v581
      %v589 = vmul.f32 %v569, %v581
      %v590 = vmul.f32 %v570, %v581
      %v591 = vmul.f32 %v571, %v581
      %v592 = vmul.f32 %v572, %v581
      %v593 = vmul.f32 %v573, %v581
      %v594 = vmul.f32 %v574, %v581
      %v595 = vmul.f32 %v575, %v581
      %v596 = vmul.f32 %v576, %v581
      %v597 = vmul.f32 %v577, %v581
      %v598 = vmul.f32 %v578, %v581
      %vm599 = vcmask 130048
      %v600 = vsel %vm599, %v583, 0.0
      %601 = vadd.xlane.f32.xlu0 %v600
      %v602 = vpop.xlane.xlu0 %601
      %v603 = vsel %vm599, %v584, 0.0
      %604 = vadd.xlane.f32.xlu0 %v603
      %v605 = vpop.xlane.xlu0 %604
      %v606 = vsel %vm599, %v585, 0.0
      %607 = vadd.xlane.f32.xlu0 %v606
      %v608 = vpop.xlane.xlu0 %607
      %v609 = vsel %vm599, %v586, 0.0
      %610 = vadd.xlane.f32.xlu0 %v609
      %v611 = vpop.xlane.xlu0 %610
      %v612 = vsel %vm599, %v587, 0.0
      %613 = vadd.xlane.f32.xlu0 %v612
      %v614 = vpop.xlane.xlu0 %613
      %v615 = vsel %vm599, %v588, 0.0
      %616 = vadd.xlane.f32.xlu0 %v615
      %v617 = vpop.xlane.xlu0 %616
      %v618 = vsel %vm599, %v589, 0.0
      %619 = vadd.xlane.f32.xlu0 %v618
      %v620 = vpop.xlane.xlu0 %619
      %v621 = vsel %vm599, %v590, 0.0
      %622 = vadd.xlane.f32.xlu0 %v621
      %v623 = vpop.xlane.xlu0 %622
      %v624 = vsel %vm599, %v591, 0.0
      %625 = vadd.xlane.f32.xlu0 %v624
      %v626 = vpop.xlane.xlu0 %625
      %v627 = vsel %vm599, %v592, 0.0
      %628 = vadd.xlane.f32.xlu0 %v627
      %v629 = vpop.xlane.xlu0 %628
      %v630 = vsel %vm599, %v593, 0.0
      %631 = vadd.xlane.f32.xlu0 %v630
      %v632 = vpop.xlane.xlu0 %631
      %v633 = vsel %vm599, %v594, 0.0
      %634 = vadd.xlane.f32.xlu0 %v633
      %v635 = vpop.xlane.xlu0 %634
      %v636 = vsel %vm599, %v595, 0.0
      %637 = vadd.xlane.f32.xlu0 %v636
      %v638 = vpop.xlane.xlu0 %637
      %v639 = vsel %vm599, %v596, 0.0
      %640 = vadd.xlane.f32.xlu0 %v639
      %v641 = vpop.xlane.xlu0 %640
      %v642 = vsel %vm599, %v597, 0.0
      %643 = vadd.xlane.f32.xlu0 %v642
      %v644 = vpop.xlane.xlu0 %643
      %v645 = vsel %vm599, %v598, 0.0
      %646 = vadd.xlane.f32.xlu0 %v645
      %v647 = vpop.xlane.xlu0 %646
      %s648 = sld [smem:[#allocation2]]
      %v649 = vstv %s648
      %v650 = vadd.f32 %v602, %v649
      %v651 = vadd.f32 %v605, %v649
      %v652 = vadd.f32 %v608, %v649
      %v653 = vadd.f32 %v611, %v649
      %v654 = vadd.f32 %v614, %v649
      %v655 = vadd.f32 %v617, %v649
      %v656 = vadd.f32 %v620, %v649
      %v657 = vadd.f32 %v623, %v649
      %v658 = vadd.f32 %v626, %v649
      %v659 = vadd.f32 %v629, %v649
      %v660 = vadd.f32 %v632, %v649
      %v661 = vadd.f32 %v635, %v649
      %v662 = vadd.f32 %v638, %v649
      %v663 = vadd.f32 %v641, %v649
      %v664 = vadd.f32 %v644, %v649
      %v665 = vadd.f32 %v647, %v649
      %vm666 = vcmask 7168
      %667 = vst.msk [vmem:[%s281] sm:$0xff] %vm666, %v650
      %668 = vst.msk [vmem:[%s281 + $0x8] sm:$0xff] %vm666, %v651
      %669 = vst.msk [vmem:[%s281 + $0x10] sm:$0xff] %vm666, %v652
      %670 = vst.msk [vmem:[%s281 + $0x18] sm:$0xff] %vm666, %v653
      %671 = vst.msk [vmem:[%s281 + $0x20] sm:$0xff] %vm666, %v654
      %672 = vst.msk [vmem:[%s281 + $0x28] sm:$0xff] %vm666, %v655
      %673 = vst.msk [vmem:[%s281 + $0x30] sm:$0xff] %vm666, %v656
      %674 = vst.msk [vmem:[%s281 + $0x38] sm:$0xff] %vm666, %v657
      %675 = vst.msk [vmem:[%s281 + $0x40] sm:$0xff] %vm666, %v658
      %676 = vst.msk [vmem:[%s281 + $0x48] sm:$0xff] %vm666, %v659
      %677 = vst.msk [vmem:[%s281 + $0x50] sm:$0xff] %vm666, %v660
      %678 = vst.msk [vmem:[%s281 + $0x58] sm:$0xff] %vm666, %v661
      %679 = vst.msk [vmem:[%s281 + $0x60] sm:$0xff] %vm666, %v662
      %680 = vst.msk [vmem:[%s281 + $0x68] sm:$0xff] %vm666, %v663
      %681 = vst.msk [vmem:[%s281 + $0x70] sm:$0xff] %vm666, %v664
      %682 = vst.msk [vmem:[%s281 + $0x78] sm:$0xff] %vm666, %v665
      %s683 = smul.u32 16, %s19
      %p684 = scmp.lt.s32.totalorder %s683, 31
      %s685 = scalar_select %p684, %s683, 31
      %s686 = smul.addr %s685, 8
      %s687 = scalar_lea.vmem %s7, %s686
      // Predicated region
      $region49: #{tpu_custom_call.1} parent=47 // pred_check
        %p688 = pneg %p189
      $region50: #{tpu_custom_call.1} parent=47 // pred_check_branch
        %690 = sbr.rel (%p688) target = $region52
      $region51: #{tpu_custom_call.1} parent=47 // pred_region
        %s691 = smul.u32 16, %s19
      $region52: #{tpu_custom_call.1} parent=47 // pred_fallthru
        _
    $region48: #{tpu_custom_call.1} parent=5 // pred_fallthru
      _
    %p692 = scmp.le.s32.totalorder 2, %s14
    // Predicated region
    $region53: #{tpu_custom_call.1} parent=5 // pred_check
      %p693 = pneg %p692
    $region54: #{tpu_custom_call.1} parent=5 // pred_check_branch
      %695 = sbr.rel (%p693) target = $region56
    $region55: #{tpu_custom_call.1} parent=5 // pred_region
      %s696 = ssub.s32 %s14, 2
      // Predicated region
      $region57: #{tpu_custom_call.1} parent=55 // pred_check
        %p697 = pneg %p195
      $region58: #{tpu_custom_call.1} parent=55 // pred_check_branch
        %699 = sbr.rel (%p697) target = $region60
      $region59: #{tpu_custom_call.1} parent=55 // pred_region
        %s700 = smul.u32 16, %s20
        %p701 = scmp.lt.s32.totalorder %s700, 31
        %s702 = scalar_select %p701, %s700, 31
        %s703 = smul.addr %s702, 8
        %s704 = scalar_lea.vmem %s7, %s703
      $region60: #{tpu_custom_call.1} parent=55 // pred_fallthru
        _
    $region56: #{tpu_custom_call.1} parent=5 // pred_fallthru
      _
  $region6: #{tpu_custom_call.1} parent=0 // loop_footer
    %s18 = sadd.s32 1, %s14
  $region7: #{tpu_custom_call.1} parent=0 // loop_footer_branch
    %13 = sbr.rel target = $region3
  $region8: #{tpu_custom_call.1} parent=0 // loop_exit
    _

</llo_original>
